<compile_context>
chip_gen: v6e
topology: v6e:2x2x1
jax: 0.10.0
libtpu: 0.0.40
codegen_flags: <defaults>
</compile_context>

<pallas_src>
import math
import functools

import jax
import jax.numpy as jnp
from jax.experimental import pallas as pl
from jax.experimental.pallas import tpu as pltpu

# ----------------------------- config (toy) ----------------------------------
BATCH = 2
SEQ = 8        # T
N_EMBD = 32    # C
N_HEAD = 4
HEAD_DIM = N_EMBD // N_HEAD


# ------------------------------- kernel --------------------------------------
def eda_kernel(x_ref, enc_ref, wqkv_ref, bqkv_ref, wp_ref, bp_ref, o_ref,
               *, n_head, scale):
    T = x_ref.shape[1]
    C = x_ref.shape[2]
    hd = C // n_head

    x = x_ref[0]                                   # (T, C)  query source
    enc = enc_ref[0]                               # (T, C)  key/value source

    # Fused QKV projection: one (2T, C) x (C, 3C) MXU op (96-lane output).
    # q is read from the x-rows, k/v from the enc-rows; the unused cross terms
    # are wasted MXU work but the MXU is idle at these shapes anyway.
    xe = jnp.concatenate([x, enc], axis=0)         # (2T, C)
    qkv = jnp.dot(xe, wqkv_ref[...],
                  preferred_element_type=jnp.float32) + bqkv_ref[...]  # (2T, 3C)

    q = qkv[:T, 0 * C:1 * C]                       # (T, C) from x
    k = qkv[T:, 1 * C:2 * C]                       # (T, C) from enc_out
    v = qkv[T:, 2 * C:3 * C]                       # (T, C) from enc_out

    # Per-head scaled-dot-product attention (no mask), heads unrolled
    # (n_head is a small static constant); everything stays in vregs.
    heads = []
    for h in range(n_head):
        sl = slice(h * hd, (h + 1) * hd)
        qh, kh, vh = q[:, sl], k[:, sl], v[:, sl]  # (T, hd)
        s = jnp.dot(qh, kh.T, preferred_element_type=jnp.float32) * scale
        s = s - jnp.max(s, axis=-1, keepdims=True)
        e = jnp.exp(s)
        p = e / jnp.sum(e, axis=-1, keepdims=True)
        # TODO(synk): attn_drop(p) is identity at inference.
        heads.append(jnp.dot(p, vh, preferred_element_type=jnp.float32))

    y = jnp.concatenate(heads, axis=-1)            # (T, C)  merged heads

    # Output projection fused in the same kernel.
    # TODO(synk): resid_drop is identity at inference.
    o_ref[0] = (jnp.dot(y, wp_ref[...], preferred_element_type=jnp.float32)
                + bp_ref[...])


# ------------------------------ wrapper ---------------------------------------
def encoder_decoder_attention(x, enc_out, wqkv, bqkv, wproj, bproj,
                              *, n_head=N_HEAD):
    B, T, C = x.shape
    assert C % n_head == 0
    scale = 1.0 / math.sqrt(C // n_head)
    kern = functools.partial(eda_kernel, n_head=n_head, scale=scale)

    act_spec = pl.BlockSpec((1, T, C), lambda b: (b, 0, 0))
    return pl.pallas_call(
        kern,
        out_shape=jax.ShapeDtypeStruct((B, T, C), jnp.float32),
        grid=(B,),
        in_specs=[
            act_spec,                                        # x
            act_spec,                                        # enc_out
            pl.BlockSpec((C, 3 * C), lambda b: (0, 0)),      # wq|wk|wv fused
            pl.BlockSpec((1, 3 * C), lambda b: (0, 0)),      # bq|bk|bv fused
            pl.BlockSpec((C, C), lambda b: (0, 0)),          # wproj
            pl.BlockSpec((1, C), lambda b: (0, 0)),          # bproj
        ],
        out_specs=act_spec,
        compiler_params=pltpu.CompilerParams(
            dimension_semantics=("parallel",)),              # v7x: 2 TCs
    )(x, enc_out, wqkv, bqkv, wproj, bproj)


# ------------------------- pure-JAX reference ---------------------------------
def reference(x, enc_out, wqkv, bqkv, wproj, bproj, *, n_head=N_HEAD):
    B, T, C = x.shape
    hd = C // n_head
    q = x @ wqkv[:, 0 * C:1 * C] + bqkv[0, 0 * C:1 * C]
    k = enc_out @ wqkv[:, 1 * C:2 * C] + bqkv[0, 1 * C:2 * C]
    v = enc_out @ wqkv[:, 2 * C:3 * C] + bqkv[0, 2 * C:3 * C]

    def split(z):
        return z.reshape(B, T, n_head, hd).transpose(0, 2, 1, 3)

    q, k, v = split(q), split(k), split(v)
    att = (q @ jnp.swapaxes(k, -1, -2)) * (1.0 / math.sqrt(hd))
    att = jax.nn.softmax(att, axis=-1)
    y = (att @ v).transpose(0, 2, 1, 3).reshape(B, T, C)
    return y @ wproj + bproj[0]


# --------------------------------- main ----------------------------------------
if __name__ == "__main__":
    key = jax.random.PRNGKey(0)
    kx, ke, kw, kb, kp, kbp = jax.random.split(key, 6)

    x = jax.random.normal(kx, (BATCH, SEQ, N_EMBD), jnp.float32)
    enc_out = jax.random.normal(ke, (BATCH, SEQ, N_EMBD), jnp.float32)

    # Weights stored (in, out); fused wq|wk|wv -> (C, 3C), bq|bk|bv -> (1, 3C).
    wqkv = jax.random.normal(kw, (N_EMBD, 3 * N_EMBD), jnp.float32) * 0.02
    bqkv = jax.random.normal(kb, (1, 3 * N_EMBD), jnp.float32) * 0.02
    wproj = jax.random.normal(kp, (N_EMBD, N_EMBD), jnp.float32) * 0.02
    bproj = jax.random.normal(kbp, (1, N_EMBD), jnp.float32) * 0.02

    fwd = jax.jit(encoder_decoder_attention)
    out = fwd(x, enc_out, wqkv, bqkv, wproj, bproj)
    jax.block_until_ready(out)

    assert out.shape == (BATCH, SEQ, N_EMBD)
    ref = reference(x, enc_out, wqkv, bqkv, wproj, bproj)
    assert jnp.allclose(out, ref, atol=1e-3, rtol=1e-3), \
        f"max abs diff {jnp.max(jnp.abs(out - ref))}"
    print("KERNEL_OK")
</pallas_src>

<mosaic_0001>
module attributes {stable_mosaic.version = 11 : i64} {
  func.func @eda_kernel(%arg0: i32, %arg1: memref<1x8x32xf32, #tpu.memory_space<vmem>>, %arg2: memref<1x8x32xf32, #tpu.memory_space<vmem>>, %arg3: memref<32x96xf32, #tpu.memory_space<vmem>>, %arg4: memref<1x96xf32, #tpu.memory_space<vmem>>, %arg5: memref<32x32xf32, #tpu.memory_space<vmem>>, %arg6: memref<1x32xf32, #tpu.memory_space<vmem>>, %arg7: memref<1x8x32xf32, #tpu.memory_space<vmem>>) attributes {dimension_semantics = [#tpu.dimension_semantics<parallel>], iteration_bounds = array<i64: 2>, scalar_prefetch = 0 : i64, scratch_operands = 0 : i64, tpu.core_type = #tpu.core_type<tc>, window_params = [{transform_indices = @transform_0, window_bounds = array<i64: 1, 8, 32>}, {transform_indices = @transform_1, window_bounds = array<i64: 1, 8, 32>}, {pipeline_mode = #tpu.pipeline_mode<synchronous>, transform_indices = @transform_2, window_bounds = array<i64: 32, 96>}, {pipeline_mode = #tpu.pipeline_mode<synchronous>, transform_indices = @transform_3, window_bounds = array<i64: 1, 96>}, {pipeline_mode = #tpu.pipeline_mode<synchronous>, transform_indices = @transform_4, window_bounds = array<i64: 32, 32>}, {pipeline_mode = #tpu.pipeline_mode<synchronous>, transform_indices = @transform_5, window_bounds = array<i64: 1, 32>}, {transform_indices = @transform_6, window_bounds = array<i64: 1, 8, 32>}]} {
    %c0 = arith.constant 0 : index
    %c0_0 = arith.constant 0 : index
    %c0_1 = arith.constant 0 : index
    %0 = vector.load %arg1[%c0, %c0_0, %c0_1] : memref<1x8x32xf32, #tpu.memory_space<vmem>>, vector<1x8x32xf32>
    %1 = vector.shape_cast %0 : vector<1x8x32xf32> to vector<8x32xf32>
    %c0_2 = arith.constant 0 : index
    %c0_3 = arith.constant 0 : index
    %c0_4 = arith.constant 0 : index
    %2 = vector.load %arg2[%c0_2, %c0_3, %c0_4] : memref<1x8x32xf32, #tpu.memory_space<vmem>>, vector<1x8x32xf32>
    %3 = vector.shape_cast %2 : vector<1x8x32xf32> to vector<8x32xf32>
    %4 = tpu.concatenate %1, %3 in 0 : vector<8x32xf32>, vector<8x32xf32> -> vector<16x32xf32>
    %c0_5 = arith.constant 0 : index
    %c0_6 = arith.constant 0 : index
    %5 = vector.load %arg3[%c0_5, %c0_6] : memref<32x96xf32, #tpu.memory_space<vmem>>, vector<32x96xf32>
    %cst = arith.constant dense<0.000000e+00> : vector<16x96xf32>
    %6 = tpu.matmul %4, %5, %cst {dimension_numbers = #tpu.dot_dimension_numbers<[1], [0], [0], [1], [0, 0, 1, 1], [], []>} : vector<16x32xf32>, vector<32x96xf32>, vector<16x96xf32> -> vector<16x96xf32>
    %c0_7 = arith.constant 0 : index
    %c0_8 = arith.constant 0 : index
    %7 = vector.load %arg4[%c0_7, %c0_8] : memref<1x96xf32, #tpu.memory_space<vmem>>, vector<1x96xf32>
    %8 = vector.broadcast %7 : vector<1x96xf32> to vector<16x96xf32>
    %9 = arith.addf %6, %8 : vector<16x96xf32>
    %10 = vector.extract_strided_slice %9 {offsets = [0, 0], sizes = [8, 32], strides = [1, 1]} : vector<16x96xf32> to vector<8x32xf32>
    %11 = vector.extract_strided_slice %9 {offsets = [8, 32], sizes = [8, 32], strides = [1, 1]} : vector<16x96xf32> to vector<8x32xf32>
    %12 = vector.extract_strided_slice %9 {offsets = [8, 64], sizes = [8, 32], strides = [1, 1]} : vector<16x96xf32> to vector<8x32xf32>
    %13 = vector.extract_strided_slice %10 {offsets = [0, 0], sizes = [8, 8], strides = [1, 1]} : vector<8x32xf32> to vector<8x8xf32>
    %14 = vector.extract_strided_slice %11 {offsets = [0, 0], sizes = [8, 8], strides = [1, 1]} : vector<8x32xf32> to vector<8x8xf32>
    %15 = vector.extract_strided_slice %12 {offsets = [0, 0], sizes = [8, 8], strides = [1, 1]} : vector<8x32xf32> to vector<8x8xf32>
    %16 = tpu.transpose %14, [1, 0] : vector<8x8xf32> -> vector<8x8xf32>
    %cst_9 = arith.constant dense<0.000000e+00> : vector<8x8xf32>
    %17 = tpu.matmul %13, %16, %cst_9 {dimension_numbers = #tpu.dot_dimension_numbers<[1], [0], [0], [1], [0, 0, 1, 1], [], []>} : vector<8x8xf32>, vector<8x8xf32>, vector<8x8xf32> -> vector<8x8xf32>
    %cst_10 = arith.constant 0.353553385 : f32
    %18 = vector.broadcast %cst_10 : f32 to vector<8x8xf32>
    %19 = arith.mulf %17, %18 : vector<8x8xf32>
    %cst_11 = arith.constant dense<0xFF800000> : vector<8xf32>
    %20 = vector.multi_reduction <maximumf>, %19, %cst_11 [1] : vector<8x8xf32> to vector<8xf32>
    %21 = vector.shape_cast %20 : vector<8xf32> to vector<8x1xf32>
    %22 = vector.broadcast %21 : vector<8x1xf32> to vector<8x8xf32>
    %23 = arith.subf %19, %22 : vector<8x8xf32>
    %24 = math.exp %23 : vector<8x8xf32>
    %cst_12 = arith.constant dense<0.000000e+00> : vector<8xf32>
    %25 = vector.multi_reduction <add>, %24, %cst_12 [1] : vector<8x8xf32> to vector<8xf32>
    %26 = vector.shape_cast %25 : vector<8xf32> to vector<8x1xf32>
    %27 = vector.broadcast %26 : vector<8x1xf32> to vector<8x8xf32>
    %28 = arith.divf %24, %27 : vector<8x8xf32>
    %cst_13 = arith.constant dense<0.000000e+00> : vector<8x8xf32>
    %29 = tpu.matmul %28, %15, %cst_13 {dimension_numbers = #tpu.dot_dimension_numbers<[1], [0], [0], [1], [0, 0, 1, 1], [], []>} : vector<8x8xf32>, vector<8x8xf32>, vector<8x8xf32> -> vector<8x8xf32>
    %30 = vector.extract_strided_slice %10 {offsets = [0, 8], sizes = [8, 8], strides = [1, 1]} : vector<8x32xf32> to vector<8x8xf32>
    %31 = vector.extract_strided_slice %11 {offsets = [0, 8], sizes = [8, 8], strides = [1, 1]} : vector<8x32xf32> to vector<8x8xf32>
    %32 = vector.extract_strided_slice %12 {offsets = [0, 8], sizes = [8, 8], strides = [1, 1]} : vector<8x32xf32> to vector<8x8xf32>
    %33 = tpu.transpose %31, [1, 0] : vector<8x8xf32> -> vector<8x8xf32>
    %cst_14 = arith.constant dense<0.000000e+00> : vector<8x8xf32>
    %34 = tpu.matmul %30, %33, %cst_14 {dimension_numbers = #tpu.dot_dimension_numbers<[1], [0], [0], [1], [0, 0, 1, 1], [], []>} : vector<8x8xf32>, vector<8x8xf32>, vector<8x8xf32> -> vector<8x8xf32>
    %cst_15 = arith.constant 0.353553385 : f32
    %35 = vector.broadcast %cst_15 : f32 to vector<8x8xf32>
    %36 = arith.mulf %34, %35 : vector<8x8xf32>
    %cst_16 = arith.constant dense<0xFF800000> : vector<8xf32>
    %37 = vector.multi_reduction <maximumf>, %36, %cst_16 [1] : vector<8x8xf32> to vector<8xf32>
    %38 = vector.shape_cast %37 : vector<8xf32> to vector<8x1xf32>
    %39 = vector.broadcast %38 : vector<8x1xf32> to vector<8x8xf32>
    %40 = arith.subf %36, %39 : vector<8x8xf32>
    %41 = math.exp %40 : vector<8x8xf32>
    %cst_17 = arith.constant dense<0.000000e+00> : vector<8xf32>
    %42 = vector.multi_reduction <add>, %41, %cst_17 [1] : vector<8x8xf32> to vector<8xf32>
    %43 = vector.shape_cast %42 : vector<8xf32> to vector<8x1xf32>
    %44 = vector.broadcast %43 : vector<8x1xf32> to vector<8x8xf32>
    %45 = arith.divf %41, %44 : vector<8x8xf32>
    %cst_18 = arith.constant dense<0.000000e+00> : vector<8x8xf32>
    %46 = tpu.matmul %45, %32, %cst_18 {dimension_numbers = #tpu.dot_dimension_numbers<[1], [0], [0], [1], [0, 0, 1, 1], [], []>} : vector<8x8xf32>, vector<8x8xf32>, vector<8x8xf32> -> vector<8x8xf32>
    %47 = vector.extract_strided_slice %10 {offsets = [0, 16], sizes = [8, 8], strides = [1, 1]} : vector<8x32xf32> to vector<8x8xf32>
    %48 = vector.extract_strided_slice %11 {offsets = [0, 16], sizes = [8, 8], strides = [1, 1]} : vector<8x32xf32> to vector<8x8xf32>
    %49 = vector.extract_strided_slice %12 {offsets = [0, 16], sizes = [8, 8], strides = [1, 1]} : vector<8x32xf32> to vector<8x8xf32>
    %50 = tpu.transpose %48, [1, 0] : vector<8x8xf32> -> vector<8x8xf32>
    %cst_19 = arith.constant dense<0.000000e+00> : vector<8x8xf32>
    %51 = tpu.matmul %47, %50, %cst_19 {dimension_numbers = #tpu.dot_dimension_numbers<[1], [0], [0], [1], [0, 0, 1, 1], [], []>} : vector<8x8xf32>, vector<8x8xf32>, vector<8x8xf32> -> vector<8x8xf32>
    %cst_20 = arith.constant 0.353553385 : f32
    %52 = vector.broadcast %cst_20 : f32 to vector<8x8xf32>
    %53 = arith.mulf %51, %52 : vector<8x8xf32>
    %cst_21 = arith.constant dense<0xFF800000> : vector<8xf32>
    %54 = vector.multi_reduction <maximumf>, %53, %cst_21 [1] : vector<8x8xf32> to vector<8xf32>
    %55 = vector.shape_cast %54 : vector<8xf32> to vector<8x1xf32>
    %56 = vector.broadcast %55 : vector<8x1xf32> to vector<8x8xf32>
    %57 = arith.subf %53, %56 : vector<8x8xf32>
    %58 = math.exp %57 : vector<8x8xf32>
    %cst_22 = arith.constant dense<0.000000e+00> : vector<8xf32>
    %59 = vector.multi_reduction <add>, %58, %cst_22 [1] : vector<8x8xf32> to vector<8xf32>
    %60 = vector.shape_cast %59 : vector<8xf32> to vector<8x1xf32>
    %61 = vector.broadcast %60 : vector<8x1xf32> to vector<8x8xf32>
    %62 = arith.divf %58, %61 : vector<8x8xf32>
    %cst_23 = arith.constant dense<0.000000e+00> : vector<8x8xf32>
    %63 = tpu.matmul %62, %49, %cst_23 {dimension_numbers = #tpu.dot_dimension_numbers<[1], [0], [0], [1], [0, 0, 1, 1], [], []>} : vector<8x8xf32>, vector<8x8xf32>, vector<8x8xf32> -> vector<8x8xf32>
    %64 = vector.extract_strided_slice %10 {offsets = [0, 24], sizes = [8, 8], strides = [1, 1]} : vector<8x32xf32> to vector<8x8xf32>
    %65 = vector.extract_strided_slice %11 {offsets = [0, 24], sizes = [8, 8], strides = [1, 1]} : vector<8x32xf32> to vector<8x8xf32>
    %66 = vector.extract_strided_slice %12 {offsets = [0, 24], sizes = [8, 8], strides = [1, 1]} : vector<8x32xf32> to vector<8x8xf32>
    %67 = tpu.transpose %65, [1, 0] : vector<8x8xf32> -> vector<8x8xf32>
    %cst_24 = arith.constant dense<0.000000e+00> : vector<8x8xf32>
    %68 = tpu.matmul %64, %67, %cst_24 {dimension_numbers = #tpu.dot_dimension_numbers<[1], [0], [0], [1], [0, 0, 1, 1], [], []>} : vector<8x8xf32>, vector<8x8xf32>, vector<8x8xf32> -> vector<8x8xf32>
    %cst_25 = arith.constant 0.353553385 : f32
    %69 = vector.broadcast %cst_25 : f32 to vector<8x8xf32>
    %70 = arith.mulf %68, %69 : vector<8x8xf32>
    %cst_26 = arith.constant dense<0xFF800000> : vector<8xf32>
    %71 = vector.multi_reduction <maximumf>, %70, %cst_26 [1] : vector<8x8xf32> to vector<8xf32>
    %72 = vector.shape_cast %71 : vector<8xf32> to vector<8x1xf32>
    %73 = vector.broadcast %72 : vector<8x1xf32> to vector<8x8xf32>
    %74 = arith.subf %70, %73 : vector<8x8xf32>
    %75 = math.exp %74 : vector<8x8xf32>
    %cst_27 = arith.constant dense<0.000000e+00> : vector<8xf32>
    %76 = vector.multi_reduction <add>, %75, %cst_27 [1] : vector<8x8xf32> to vector<8xf32>
    %77 = vector.shape_cast %76 : vector<8xf32> to vector<8x1xf32>
    %78 = vector.broadcast %77 : vector<8x1xf32> to vector<8x8xf32>
    %79 = arith.divf %75, %78 : vector<8x8xf32>
    %cst_28 = arith.constant dense<0.000000e+00> : vector<8x8xf32>
    %80 = tpu.matmul %79, %66, %cst_28 {dimension_numbers = #tpu.dot_dimension_numbers<[1], [0], [0], [1], [0, 0, 1, 1], [], []>} : vector<8x8xf32>, vector<8x8xf32>, vector<8x8xf32> -> vector<8x8xf32>
    %81 = tpu.concatenate %29, %46, %63, %80 in 1 : vector<8x8xf32>, vector<8x8xf32>, vector<8x8xf32>, vector<8x8xf32> -> vector<8x32xf32>
    %c0_29 = arith.constant 0 : index
    %c0_30 = arith.constant 0 : index
    %82 = vector.load %arg5[%c0_29, %c0_30] : memref<32x32xf32, #tpu.memory_space<vmem>>, vector<32x32xf32>
    %cst_31 = arith.constant dense<0.000000e+00> : vector<8x32xf32>
    %83 = tpu.matmul %81, %82, %cst_31 {dimension_numbers = #tpu.dot_dimension_numbers<[1], [0], [0], [1], [0, 0, 1, 1], [], []>} : vector<8x32xf32>, vector<32x32xf32>, vector<8x32xf32> -> vector<8x32xf32>
    %c0_32 = arith.constant 0 : index
    %c0_33 = arith.constant 0 : index
    %84 = vector.load %arg6[%c0_32, %c0_33] : memref<1x32xf32, #tpu.memory_space<vmem>>, vector<1x32xf32>
    %85 = vector.broadcast %84 : vector<1x32xf32> to vector<8x32xf32>
    %86 = arith.addf %83, %85 : vector<8x32xf32>
    %c0_34 = arith.constant 0 : index
    %c0_35 = arith.constant 0 : index
    %c0_36 = arith.constant 0 : index
    %87 = vector.load %arg7[%c0_34, %c0_35, %c0_36] : memref<1x8x32xf32, #tpu.memory_space<vmem>>, vector<1x8x32xf32>
    %88 = vector.shape_cast %87 : vector<1x8x32xf32> to vector<8x32xf32>
    %89 = vector.shape_cast %86 : vector<8x32xf32> to vector<1x8x32xf32>
    tpu.vector_store %arg7[%c0_34, %c0_35, %c0_36], %89 {strides = array<i32>} : memref<1x8x32xf32, #tpu.memory_space<vmem>>, vector<1x8x32xf32>,
    return
  }
  func.func @transform_0(%arg0: i32) -> (i32, i32, i32) {
    %c0_i32 = arith.constant 0 : i32
    %c0_i32_0 = arith.constant 0 : i32
    %c0_i32_1 = arith.constant 0 : i32
    return %arg0, %c0_i32, %c0_i32_0 : i32, i32, i32
  }
  func.func @transform_1(%arg0: i32) -> (i32, i32, i32) {
    %c0_i32 = arith.constant 0 : i32
    %c0_i32_0 = arith.constant 0 : i32
    %c0_i32_1 = arith.constant 0 : i32
    return %arg0, %c0_i32, %c0_i32_0 : i32, i32, i32
  }
  func.func @transform_2(%arg0: i32) -> (i32, i32) {
    %c0_i32 = arith.constant 0 : i32
    %c0_i32_0 = arith.constant 0 : i32
    %c0_i32_1 = arith.constant 0 : i32
    return %c0_i32, %c0_i32_0 : i32, i32
  }
  func.func @transform_3(%arg0: i32) -> (i32, i32) {
    %c0_i32 = arith.constant 0 : i32
    %c0_i32_0 = arith.constant 0 : i32
    %c0_i32_1 = arith.constant 0 : i32
    return %c0_i32, %c0_i32_0 : i32, i32
  }
  func.func @transform_4(%arg0: i32) -> (i32, i32) {
    %c0_i32 = arith.constant 0 : i32
    %c0_i32_0 = arith.constant 0 : i32
    %c0_i32_1 = arith.constant 0 : i32
    return %c0_i32, %c0_i32_0 : i32, i32
  }
  func.func @transform_5(%arg0: i32) -> (i32, i32) {
    %c0_i32 = arith.constant 0 : i32
    %c0_i32_0 = arith.constant 0 : i32
    %c0_i32_1 = arith.constant 0 : i32
    return %c0_i32, %c0_i32_0 : i32, i32
  }
  func.func @transform_6(%arg0: i32) -> (i32, i32, i32) {
    %c0_i32 = arith.constant 0 : i32
    %c0_i32_0 = arith.constant 0 : i32
    %c0_i32_1 = arith.constant 0 : i32
    return %arg0, %c0_i32, %c0_i32_0 : i32, i32, i32
  }
}

</mosaic_0001>

<llo_original>
// kernel: encoder_decoder_attention.1
$region0: #{encoder_decoder_attention.1}
  #allocation0 [shape = 'u32[]', space=smem, size = 0x4, offset = 0x4, fixed_abs, tag = 'smem constant byte address 0x4 - core index']
  #allocation1 [shape = 'u32[144,128]{1,0:T(1,128)}', space=vmem, size = 0x12000, scoped, tag = 'internal scratch']
  %s0 = inlined_call_operand.hbm [shape: f32[2,8,32], index: 0, kind: input, shape index: {}]
  %s1 = inlined_call_operand.hbm [shape: f32[2,8,32], index: 1, kind: input, shape index: {}]
  %s2 = inlined_call_operand.hbm [shape: f32[32,96], index: 2, kind: input, shape index: {}]
  %s3 = inlined_call_operand.vmem [shape: f32[1,96], index: 3, kind: input, shape index: {}]
  %s4 = inlined_call_operand.hbm [shape: f32[32,32], index: 4, kind: input, shape index: {}]
  %s5 = inlined_call_operand.vmem [shape: f32[1,32], index: 5, kind: input, shape index: {}]
  %s6 = inlined_call_operand.hbm [shape: f32[2,8,32], index: 6, kind: output, shape index: {}]
  %s7 = sld [smem:[#allocation0]]
  $region73: #{encoder_decoder_attention.1} parent=0
    _
  %s9 = ssub.s32 1, %s7
  %s10 = scalar_select 0, %s9, %s7
  $region1: #{encoder_decoder_attention.1} parent=0
    #allocation2 [shape = 'u8[8192]{0}', space=vmem, size = 0x2000, scoped, tag = 'input window, operand 0']
    #allocation3 [shape = 's32[2]{0}', space=sflag, size = 0x8, scoped, tag = 'scoped memory for encoder_decoder_attention.1']
    #allocation4 [shape = 's32[2]{0}', space=sflag, size = 0x8, scoped, tag = 'scoped memory for encoder_decoder_attention.1']
    #allocation5 [shape = 'u8[8192]{0}', space=vmem, size = 0x2000, scoped, tag = 'input window, operand 1']
    #allocation6 [shape = 's32[2]{0}', space=sflag, size = 0x8, scoped, tag = 'scoped memory for encoder_decoder_attention.1']
    #allocation7 [shape = 'u8[16384]{0}', space=vmem, size = 0x4000, scoped, tag = 'input window, operand 2, single buffered']
    #allocation8 [shape = 'u8[16384]{0}', space=vmem, size = 0x4000, scoped, tag = 'input window, operand 4, single buffered']
    #allocation9 [shape = 's32[1]{0}', space=sflag, size = 0x4, scoped, tag = 'scoped memory for encoder_decoder_attention.1']
    #allocation10 [shape = 'u8[8192]{0}', space=vmem, size = 0x2000, scoped, tag = 'output window, operand 0']
    %11 = vsyncpa [#allocation3], 0
    %s12 = scalar_lea.sflag [#allocation3], 1
    %13 = vsyncpa %s12, 0
    %14 = vsyncpa [#allocation6], 0
    %s15 = scalar_lea.sflag [#allocation6], 1
    %16 = vsyncpa %s15, 0
    %17 = vsyncpa [#allocation9], 0
    %18 = vsyncpa [#allocation4], 0
    %s19 = scalar_lea.sflag [#allocation4], 1
    %20 = vsyncpa %s19, 0
    loop: start=0, step=1, limit=4
    $region2: #{encoder_decoder_attention.1} parent=1 // loop_pre_header
      _
    $region3: #{encoder_decoder_attention.1} parent=1 // loop_header
      %s22 = sphi 0, %s26
      %p23 = scmp.ge.s32.totalorder %s22, 4
      %s32 = sphi 0, %s34
      %s35 = sphi 0, %s32
      %s36 = sphi 0, %s35
      %s52 = sphi 0, %s36
      %s58 = sphi 0, %s60
      %s61 = sphi 0, %s58
      %s62 = sphi 0, %s61
      %s78 = sphi 0, %s62
      %s82 = sphi 0, %s82
      %s84 = sphi 0, %s82
      %s85 = sphi 0, %s84
      %s99 = sphi 0, %s85
      %s103 = sphi 0, %s103
      %s105 = sphi 0, %s103
      %s106 = sphi 0, %s105
      %s120 = sphi 0, %s106
      %s124 = sphi 0, %s124
      %s126 = sphi 0, %s124
      %s127 = sphi 0, %s126
      %s141 = sphi 0, %s127
      %s145 = sphi 0, %s145
      %s147 = sphi 0, %s145
      %s148 = sphi 0, %s147
      %s162 = sphi 0, %s148
      %s168 = sphi 0, %s170
      %s171 = sphi 0, %s168
      %s172 = sphi 0, %s171
      %s188 = sphi 0, %s172
    $region4: #{encoder_decoder_attention.1} parent=1 // loop_header_branch
      %25 = sbr.rel (%p23) target = $region8
    $region5: #{encoder_decoder_attention.1} parent=1 // loop_body
      %s27 = ssub.s32 %s22, 1
      %s28 = ssub.s32 %s22, 2
      %s29 = sadd.s32 %s22, 1
      %s30 = ssub.s32 %s22, %s29
      %p31 = scmp.eq.s32.totalorder %s30, 0
      %s33 = sadd.s32 %s32, 1
      %s34 = scalar_select %p31, %s32, %s33
      %p37 = pneg %p31
      %p38 = scmp.eq.s32.totalorder %s22, 1
      %p39 = por %p37, %p38
      %p40 = scmp.ne.s32.totalorder %s32, %s35
      %p41 = scmp.eq.s32.totalorder %s22, 0
      %p42 = por %p40, %p41
      %p43 = scmp.ne.s32.totalorder %s32, %s35
      %p44 = scmp.eq.s32.totalorder %s27, 1
      %p45 = por %p43, %p44
      %p46 = scmp.ne.s32.totalorder %s35, %s36
      %p47 = scmp.eq.s32.totalorder %s27, 0
      %p48 = por %p46, %p47
      %p49 = scmp.ne.s32.totalorder %s35, %s36
      %p50 = scmp.eq.s32.totalorder %s28, 1
      %p51 = por %p49, %p50
      %p53 = scmp.ne.s32.totalorder %s36, %s52
      %p54 = scmp.eq.s32.totalorder %s28, 0
      %p55 = por %p53, %p54
      %s56 = ssub.s32 %s22, %s29
      %p57 = scmp.eq.s32.totalorder %s56, 0
      %s59 = sadd.s32 %s58, 1
      %s60 = scalar_select %p57, %s58, %s59
      %p63 = pneg %p57
      %p64 = scmp.eq.s32.totalorder %s22, 1
      %p65 = por %p63, %p64
      %p66 = scmp.ne.s32.totalorder %s58, %s61
      %p67 = scmp.eq.s32.totalorder %s22, 0
      %p68 = por %p66, %p67
      %p69 = scmp.ne.s32.totalorder %s58, %s61
      %p70 = scmp.eq.s32.totalorder %s27, 1
      %p71 = por %p69, %p70
      %p72 = scmp.ne.s32.totalorder %s61, %s62
      %p73 = scmp.eq.s32.totalorder %s27, 0
      %p74 = por %p72, %p73
      %p75 = scmp.ne.s32.totalorder %s61, %s62
      %p76 = scmp.eq.s32.totalorder %s28, 1
      %p77 = por %p75, %p76
      %p79 = scmp.ne.s32.totalorder %s62, %s78
      %p80 = scmp.eq.s32.totalorder %s28, 0
      %p81 = por %p79, %p80
      %s83 = sadd.s32 %s82, 1
      %p86 = scmp.eq.s32.totalorder %s22, 1
      %p87 = scmp.ne.s32.totalorder %s82, %s84
      %p88 = scmp.eq.s32.totalorder %s22, 0
      %p89 = por %p87, %p88
      %p90 = scmp.ne.s32.totalorder %s82, %s84
      %p91 = scmp.eq.s32.totalorder %s27, 1
      %p92 = por %p90, %p91
      %p93 = scmp.ne.s32.totalorder %s84, %s85
      %p94 = scmp.eq.s32.totalorder %s27, 0
      %p95 = por %p93, %p94
      %p96 = scmp.ne.s32.totalorder %s84, %s85
      %p97 = scmp.eq.s32.totalorder %s28, 1
      %p98 = por %p96, %p97
      %p100 = scmp.ne.s32.totalorder %s85, %s99
      %p101 = scmp.eq.s32.totalorder %s28, 0
      %p102 = por %p100, %p101
      %s104 = sadd.s32 %s103, 1
      %p107 = scmp.eq.s32.totalorder %s22, 1
      %p108 = scmp.ne.s32.totalorder %s103, %s105
      %p109 = scmp.eq.s32.totalorder %s22, 0
      %p110 = por %p108, %p109
      %p111 = scmp.ne.s32.totalorder %s103, %s105
      %p112 = scmp.eq.s32.totalorder %s27, 1
      %p113 = por %p111, %p112
      %p114 = scmp.ne.s32.totalorder %s105, %s106
      %p115 = scmp.eq.s32.totalorder %s27, 0
      %p116 = por %p114, %p115
      %p117 = scmp.ne.s32.totalorder %s105, %s106
      %p118 = scmp.eq.s32.totalorder %s28, 1
      %p119 = por %p117, %p118
      %p121 = scmp.ne.s32.totalorder %s106, %s120
      %p122 = scmp.eq.s32.totalorder %s28, 0
      %p123 = por %p121, %p122
      %s125 = sadd.s32 %s124, 1
      %p128 = scmp.eq.s32.totalorder %s22, 1
      %p129 = scmp.ne.s32.totalorder %s124, %s126
      %p130 = scmp.eq.s32.totalorder %s22, 0
      %p131 = por %p129, %p130
      %p132 = scmp.ne.s32.totalorder %s124, %s126
      %p133 = scmp.eq.s32.totalorder %s27, 1
      %p134 = por %p132, %p133
      %p135 = scmp.ne.s32.totalorder %s126, %s127
      %p136 = scmp.eq.s32.totalorder %s27, 0
      %p137 = por %p135, %p136
      %p138 = scmp.ne.s32.totalorder %s126, %s127
      %p139 = scmp.eq.s32.totalorder %s28, 1
      %p140 = por %p138, %p139
      %p142 = scmp.ne.s32.totalorder %s127, %s141
      %p143 = scmp.eq.s32.totalorder %s28, 0
      %p144 = por %p142, %p143
      %s146 = sadd.s32 %s145, 1
      %p149 = scmp.eq.s32.totalorder %s22, 1
      %p150 = scmp.ne.s32.totalorder %s145, %s147
      %p151 = scmp.eq.s32.totalorder %s22, 0
      %p152 = por %p150, %p151
      %p153 = scmp.ne.s32.totalorder %s145, %s147
      %p154 = scmp.eq.s32.totalorder %s27, 1
      %p155 = por %p153, %p154
      %p156 = scmp.ne.s32.totalorder %s147, %s148
      %p157 = scmp.eq.s32.totalorder %s27, 0
      %p158 = por %p156, %p157
      %p159 = scmp.ne.s32.totalorder %s147, %s148
      %p160 = scmp.eq.s32.totalorder %s28, 1
      %p161 = por %p159, %p160
      %p163 = scmp.ne.s32.totalorder %s148, %s162
      %p164 = scmp.eq.s32.totalorder %s28, 0
      %p165 = por %p163, %p164
      %s166 = ssub.s32 %s22, %s29
      %p167 = scmp.eq.s32.totalorder %s166, 0
      %s169 = sadd.s32 %s168, 1
      %s170 = scalar_select %p167, %s168, %s169
      %p173 = pneg %p167
      %p174 = scmp.eq.s32.totalorder %s22, 1
      %p175 = por %p173, %p174
      %p176 = scmp.ne.s32.totalorder %s168, %s171
      %p177 = scmp.eq.s32.totalorder %s22, 0
      %p178 = por %p176, %p177
      %p179 = scmp.ne.s32.totalorder %s168, %s171
      %p180 = scmp.eq.s32.totalorder %s27, 1
      %p181 = por %p179, %p180
      %p182 = scmp.ne.s32.totalorder %s171, %s172
      %p183 = scmp.eq.s32.totalorder %s27, 0
      %p184 = por %p182, %p183
      %p185 = scmp.ne.s32.totalorder %s171, %s172
      %p186 = scmp.eq.s32.totalorder %s28, 1
      %p187 = por %p185, %p186
      %p189 = scmp.ne.s32.totalorder %s172, %s188
      %p190 = scmp.eq.s32.totalorder %s28, 0
      %p191 = por %p189, %p190
      %p192 = scmp.le.s32.totalorder 1, %s22
      %p193 = scmp.lt.s32.totalorder %s22, 3
      %p194 = pnand %p192, %p193
      %p195 = pneg %p194
      // Predicated region
      $region9: #{encoder_decoder_attention.1} parent=5 // pred_check
        _
      $region10: #{encoder_decoder_attention.1} parent=5 // pred_check_branch
        %197 = sbr.rel (%p194) target = $region12
      $region11: #{encoder_decoder_attention.1} parent=5 // pred_region
        %s198 = ssub.s32 %s22, 1
        // Predicated region
        $region13: #{encoder_decoder_attention.1} parent=11 // pred_check
          %p199 = pneg %p95
        $region14: #{encoder_decoder_attention.1} parent=11 // pred_check_branch
          %201 = sbr.rel (%p199) target = $region16
        $region15: #{encoder_decoder_attention.1} parent=11 // pred_region
          %s203 = ssub.s32 512, 512
          %204 = vsyncadd [#allocation6], %s203
          %s205 = sshll.u32 [#allocation7], 4
          %s206 = int_to_ptr.vmem [resolvable:$true] %s205
          %211 = dma.hbm_to_vmem [thread:$0]  %s2, 512, %s206, [#allocation6], 128, 128, 8
        $region16: #{encoder_decoder_attention.1} parent=11 // pred_fallthru
          _
        // Predicated region
        $region17: #{encoder_decoder_attention.1} parent=11 // pred_check
          %p212 = pneg %p116
        $region18: #{encoder_decoder_attention.1} parent=11 // pred_check_branch
          %214 = sbr.rel (%p212) target = $region20
        $region19: #{encoder_decoder_attention.1} parent=11 // pred_region
          _
        $region20: #{encoder_decoder_attention.1} parent=11 // pred_fallthru
          _
        // Predicated region
        $region21: #{encoder_decoder_attention.1} parent=11 // pred_check
          %p215 = pneg %p137
        $region22: #{encoder_decoder_attention.1} parent=11 // pred_check_branch
          %217 = sbr.rel (%p215) target = $region24
        $region23: #{encoder_decoder_attention.1} parent=11 // pred_region
          %s219 = ssub.s32 512, 512
          %220 = vsyncadd [#allocation9], %s219
          %s221 = sshll.u32 [#allocation8], 4
          %s222 = int_to_ptr.vmem [resolvable:$true] %s221
          %227 = dma.hbm_to_vmem [thread:$0]  %s4, 512, %s222, [#allocation9], 128, 128, 8
        $region24: #{encoder_decoder_attention.1} parent=11 // pred_fallthru
          _
        // Predicated region
        $region25: #{encoder_decoder_attention.1} parent=11 // pred_check
          %p228 = pneg %p158
        $region26: #{encoder_decoder_attention.1} parent=11 // pred_check_branch
          %230 = sbr.rel (%p228) target = $region28
        $region27: #{encoder_decoder_attention.1} parent=11 // pred_region
          _
        $region28: #{encoder_decoder_attention.1} parent=11 // pred_fallthru
          _
      $region12: #{encoder_decoder_attention.1} parent=5 // pred_fallthru
        _
      %p231 = scmp.lt.s32.totalorder %s22, 2
      // Predicated region
      $region29: #{encoder_decoder_attention.1} parent=5 // pred_check
        %p232 = pneg %p231
      $region30: #{encoder_decoder_attention.1} parent=5 // pred_check_branch
        %234 = sbr.rel (%p232) target = $region32
      $region31: #{encoder_decoder_attention.1} parent=5 // pred_region
        // Predicated region
        $region33: #{encoder_decoder_attention.1} parent=31 // pred_check
          %p235 = pneg %p42
        $region34: #{encoder_decoder_attention.1} parent=31 // pred_check_branch
          %237 = sbr.rel (%p235) target = $region36
        $region35: #{encoder_decoder_attention.1} parent=31 // pred_region
          %s238 = sand.u32 %s32, 1
          %s239 = scalar_lea.sflag [#allocation3], %s238
          %s240 = sand.u32 %s32, 1
          %s241 = smul.addr %s240, 8
          %s242 = scalar_lea.vmem [#allocation2], %s241
          %s244 = ssub.s32 128, 128
          %245 = vsyncadd %s239, %s244
          %s246 = smul.addr %s22, 128
          %s247 = scalar_lea.hbm %s0, %s246
          %s249 = sshll.u32 %s242, 4
          %s250 = int_to_ptr.vmem [resolvable:$true] %s249
          %252 = dma.hbm_to_vmem [thread:$0]  %s247, 128, %s250, %s239
        $region36: #{encoder_decoder_attention.1} parent=31 // pred_fallthru
          _
        // Predicated region
        $region37: #{encoder_decoder_attention.1} parent=31 // pred_check
          %p253 = pneg %p68
        $region38: #{encoder_decoder_attention.1} parent=31 // pred_check_branch
          %255 = sbr.rel (%p253) target = $region40
        $region39: #{encoder_decoder_attention.1} parent=31 // pred_region
          %s256 = sand.u32 %s22, 1
          %s257 = scalar_lea.sflag [#allocation6], %s256
          %s258 = sand.u32 %s58, 1
          %s259 = smul.addr %s258, 8
          %s260 = scalar_lea.vmem [#allocation5], %s259
          %s262 = ssub.s32 128, 128
          %263 = vsyncadd %s257, %s262
          %s264 = smul.addr %s22, 128
          %s265 = scalar_lea.hbm %s1, %s264
          %s267 = sshll.u32 %s260, 4
          %s268 = int_to_ptr.vmem [resolvable:$true] %s267
          %270 = dma.hbm_to_vmem [thread:$0]  %s265, 128, %s268, %s257
        $region40: #{encoder_decoder_attention.1} parent=31 // pred_fallthru
          _
      $region32: #{encoder_decoder_attention.1} parent=5 // pred_fallthru
        _
      %p271 = scmp.le.s32.totalorder 1, %s22
      %p272 = scmp.lt.s32.totalorder %s22, 3
      %p273 = pnand %p271, %p272
      %p274 = pneg %p273
      // Predicated region
      $region41: #{encoder_decoder_attention.1} parent=5 // pred_check
        _
      $region42: #{encoder_decoder_attention.1} parent=5 // pred_check_branch
        %276 = sbr.rel (%p273) target = $region44
      $region43: #{encoder_decoder_attention.1} parent=5 // pred_region
        %s277 = ssub.s32 %s22, 1
        %s278 = sand.u32 %s35, 1
        %s279 = scalar_lea.sflag [#allocation3], %s278
        %s280 = sand.u32 %s35, 1
        %s281 = smul.addr %s280, 8
        %s282 = scalar_lea.vmem [#allocation2], %s281
        // Predicated region
        $region45: #{encoder_decoder_attention.1} parent=43 // pred_check
          %p283 = pneg %p48
        $region46: #{encoder_decoder_attention.1} parent=43 // pred_check_branch
          %285 = sbr.rel (%p283) target = $region48
        $region47: #{encoder_decoder_attention.1} parent=43 // pred_region
          %286 = dma.done %s279, 128
        $region48: #{encoder_decoder_attention.1} parent=43 // pred_fallthru
          _
        %s287 = sand.u32 %s27, 1
        %s288 = scalar_lea.sflag [#allocation6], %s287
        %s289 = sand.u32 %s61, 1
        %s290 = smul.addr %s289, 8
        %s291 = scalar_lea.vmem [#allocation5], %s290
        // Predicated region
        $region49: #{encoder_decoder_attention.1} parent=43 // pred_check
          %p292 = pneg %p74
        $region50: #{encoder_decoder_attention.1} parent=43 // pred_check_branch
          %294 = sbr.rel (%p292) target = $region52
        $region51: #{encoder_decoder_attention.1} parent=43 // pred_region
          %295 = dma.done %s288, 128
        $region52: #{encoder_decoder_attention.1} parent=43 // pred_fallthru
          _
        // Predicated region
        $region53: #{encoder_decoder_attention.1} parent=43 // pred_check
          %p296 = pneg %p95
        $region54: #{encoder_decoder_attention.1} parent=43 // pred_check_branch
          %298 = sbr.rel (%p296) target = $region56
        $region55: #{encoder_decoder_attention.1} parent=43 // pred_region
          %299 = dma.done [#allocation6], 512
        $region56: #{encoder_decoder_attention.1} parent=43 // pred_fallthru
          _
        // Predicated region
        $region57: #{encoder_decoder_attention.1} parent=43 // pred_check
          %p300 = pneg %p137
        $region58: #{encoder_decoder_attention.1} parent=43 // pred_check_branch
          %302 = sbr.rel (%p300) target = $region60
        $region59: #{encoder_decoder_attention.1} parent=43 // pred_region
          %303 = dma.done [#allocation9], 512
        $region60: #{encoder_decoder_attention.1} parent=43 // pred_fallthru
          _
        %s304 = sand.u32 %s35, 1
        %s305 = scalar_lea.sflag [#allocation3], %s304
        %s306 = sand.u32 %s35, 1
        %s307 = smul.addr %s306, 8
        %s308 = scalar_lea.vmem [#allocation2], %s307
        %p309 = pneg %p48
        %p310 = pneg %p45
        %s311 = sand.u32 %s27, 1
        %s312 = scalar_lea.sflag [#allocation6], %s311
        %s313 = sand.u32 %s61, 1
        %s314 = smul.addr %s313, 8
        %s315 = scalar_lea.vmem [#allocation5], %s314
        %p316 = pneg %p74
        %p317 = pneg %p71
        %p318 = pneg %p95
        %p319 = pneg %p92
        %p320 = pneg %p116
        %p321 = pneg %p113
        %p322 = pneg %p137
        %p323 = pneg %p134
        %p324 = pneg %p158
        %p325 = pneg %p155
        %p326 = pneg %p184
        %p327 = pneg %p181
        %s328 = sand.u32 %s171, 1
        %s329 = scalar_lea.sflag [#allocation4], %s328
        %s330 = sand.u32 %s171, 1
        %s331 = smul.addr %s330, 8
        %s332 = scalar_lea.vmem [#allocation10], %s331
        %v333 = vld [vmem:[%s282] sm:$0xff]
        %v334 = vld [vmem:[%s291] sm:$0xff]
        %v335 = vld [vmem:[#allocation7] sm:$0xff]
        %v336 = vld [vmem:[#allocation7 + $0x8] sm:$0xff]
        %v337 = vld [vmem:[#allocation7 + $0x10] sm:$0xff]
        %v338 = vld [vmem:[#allocation7 + $0x18] sm:$0xff]
        %v339 = vld [vmem:[%s3] sm:$0x1]
        %v341 = vlaneseq
        %v342 = vshrl.u32 %v341, 7
        %v343 = vsub.s32 0, %v342
        %v344 = vrot.slane %v339, %v343
        %vm346 = vcmask 261120
        %v348 = vsel %vm346, %v333, 0
        %v351 = vsel %vm346, %v334, 0
        %353 = vmatprep.subr.mxu0 0.0
        %354 = vmatpush1.msra.mxu0 0.0
        %355 = vmatprep.subr.mxu0 0.0
        %356 = vmatpush1.msra.mxu0 0.0
        %357 = vmatprep.subr.mxu0 0.0
        %358 = vmatpush1.msra.mxu0 0.0
        %359 = vmatprep.subr.mxu0 0.0
        %360 = vmatpush1.msra.mxu0 0.0
        %361 = vmatprep.subr.mxu0 0.0
        %362 = vmatpush1.msra.mxu0 0.0
        %363 = vmatprep.subr.mxu0 0.0
        %364 = vmatpush1.msra.mxu0 0.0
        %365 = vmatprep.subr.mxu0 0.0
        %366 = vmatpush1.msra.mxu0 0.0
        %367 = vmatprep.subr.mxu0 0.0
        %368 = vmatpush1.msra.mxu0 0.0
        %369 = vmatprep.subr.mxu0 0.0
        %370 = vmatpush1.msra.mxu0 0.0
        %371 = vmatprep.subr.mxu0 0.0
        %372 = vmatpush1.msra.mxu0 0.0
        %373 = vmatprep.subr.mxu0 0.0
        %374 = vmatpush1.msra.mxu0 0.0
        %375 = vmatprep.subr.mxu0 0.0
        %376 = vmatpush1.msra.mxu0 0.0
        %377 = vmatprep.subr.mxu0 0.0
        %378 = vmatpush1.msra.mxu0 %v338
        %379 = vmatprep.subr.mxu0 0.0
        %380 = vmatpush1.msra.mxu0 %v337
        %381 = vmatprep.subr.mxu0 0.0
        %382 = vmatpush1.msra.mxu0 %v336
        %383 = vmatprep.subr.mxu0 0.0
        %384 = vmatpush1.msra.mxu0 %v335
        %385 = vmatprep.subr.mxu0 0.0
        %386 = vmatpush2.msra.mxu0 0.0
        %387 = vmatprep.subr.mxu0 0.0
        %388 = vmatpush2.msra.mxu0 0.0
        %389 = vmatprep.subr.mxu0 0.0
        %390 = vmatpush2.msra.mxu0 0.0
        %391 = vmatprep.subr.mxu0 0.0
        %392 = vmatpush2.msra.mxu0 0.0
        %393 = vmatprep.subr.mxu0 0.0
        %394 = vmatpush2.msra.mxu0 0.0
        %395 = vmatprep.subr.mxu0 0.0
        %396 = vmatpush2.msra.mxu0 0.0
        %397 = vmatprep.subr.mxu0 0.0
        %398 = vmatpush2.msra.mxu0 0.0
        %399 = vmatprep.subr.mxu0 0.0
        %400 = vmatpush2.msra.mxu0 0.0
        %401 = vmatprep.subr.mxu0 0.0
        %402 = vmatpush2.msra.mxu0 0.0
        %403 = vmatprep.subr.mxu0 0.0
        %404 = vmatpush2.msra.mxu0 0.0
        %405 = vmatprep.subr.mxu0 0.0
        %406 = vmatpush2.msra.mxu0 0.0
        %407 = vmatprep.subr.mxu0 0.0
        %408 = vmatpush2.msra.mxu0 0.0
        %409 = vmatprep.subr.mxu0 0.0
        %410 = vmatpush2.msra.mxu0 0.0
        %411 = vmatprep.subr.mxu0 0.0
        %412 = vmatpush2.msra.mxu0 0.0
        %413 = vmatprep.subr.mxu0 0.0
        %414 = vmatpush2.msra.mxu0 0.0
        %415 = vmatprep.subr.mxu0 0.0
        %416 = vmatpush2.msra.mxu0 0.0
        %417 = vmatprep.mubr.f32.mxu0 0.0
        %418 = vmatmul.mubr.f32.gmra.mxu0 %v348
        %v419 = vpop.f32.mrf.mxu0
        %v420 = vadd.f32 %v344, %v419
        %v421 = vpop.f32.mrf.mxu0
        %422 = vmatprep.mubr.f32.mxu0 0.0
        %423 = vmatmul.mubr.f32.gmra.mxu0 %v351
        %v424 = vpop.f32.mrf.mxu0
        %v425 = vadd.f32 %v344, %v424
        %v426 = vpop.f32.mrf.mxu0
        %427 = vdwg.mxu0
        %429 = vrot.lane.b32.xlu0 %v425, 96
        %v430 = vpop.permute.xlu0 %429
        %vm431 = vcmask 64512
        %v433 = vsel %vm431, %v420, 0
        %v435 = vsel %vm431, %v430, 0
        %437 = vmatprep.subr.mxu0 0.0
        %438 = vmatpush1.xpose.msra.mxu0 0.0
        %439 = vmatprep.subr.mxu0 0.0
        %440 = vmatpush1.xpose.msra.mxu0 0.0
        %441 = vmatprep.subr.mxu0 0.0
        %442 = vmatpush1.xpose.msra.mxu0 0.0
        %443 = vmatprep.subr.mxu0 0.0
        %444 = vmatpush1.xpose.msra.mxu0 0.0
        %445 = vmatprep.subr.mxu0 0.0
        %446 = vmatpush1.xpose.msra.mxu0 0.0
        %447 = vmatprep.subr.mxu0 0.0
        %448 = vmatpush1.xpose.msra.mxu0 0.0
        %449 = vmatprep.subr.mxu0 0.0
        %450 = vmatpush1.xpose.msra.mxu0 0.0
        %451 = vmatprep.subr.mxu0 0.0
        %452 = vmatpush1.xpose.msra.mxu0 0.0
        %453 = vmatprep.subr.mxu0 0.0
        %454 = vmatpush1.xpose.msra.mxu0 0.0
        %455 = vmatprep.subr.mxu0 0.0
        %456 = vmatpush1.xpose.msra.mxu0 0.0
        %457 = vmatprep.subr.mxu0 0.0
        %458 = vmatpush1.xpose.msra.mxu0 0.0
        %459 = vmatprep.subr.mxu0 0.0
        %460 = vmatpush1.xpose.msra.mxu0 0.0
        %461 = vmatprep.subr.mxu0 0.0
        %462 = vmatpush1.xpose.msra.mxu0 0.0
        %463 = vmatprep.subr.mxu0 0.0
        %464 = vmatpush1.xpose.msra.mxu0 0.0
        %465 = vmatprep.subr.mxu0 0.0
        %466 = vmatpush1.xpose.msra.mxu0 0.0
        %467 = vmatprep.subr.mxu0 0.0
        %468 = vmatpush1.xpose.msra.mxu0 %v435
        %469 = vmatprep.subr.mxu0 0.0
        %470 = vmatpush2.xpose.msra.mxu0 0.0
        %471 = vmatprep.subr.mxu0 0.0
        %472 = vmatpush2.xpose.msra.mxu0 0.0
        %473 = vmatprep.subr.mxu0 0.0
        %474 = vmatpush2.xpose.msra.mxu0 0.0
        %475 = vmatprep.subr.mxu0 0.0
        %476 = vmatpush2.xpose.msra.mxu0 0.0
        %477 = vmatprep.subr.mxu0 0.0
        %478 = vmatpush2.xpose.msra.mxu0 0.0
        %479 = vmatprep.subr.mxu0 0.0
        %480 = vmatpush2.xpose.msra.mxu0 0.0
        %481 = vmatprep.subr.mxu0 0.0
        %482 = vmatpush2.xpose.msra.mxu0 0.0
        %483 = vmatprep.subr.mxu0 0.0
        %484 = vmatpush2.xpose.msra.mxu0 0.0
        %485 = vmatprep.subr.mxu0 0.0
        %486 = vmatpush2.xpose.msra.mxu0 0.0
        %487 = vmatprep.subr.mxu0 0.0
        %488 = vmatpush2.xpose.msra.mxu0 0.0
        %489 = vmatprep.subr.mxu0 0.0
        %490 = vmatpush2.xpose.msra.mxu0 0.0
        %491 = vmatprep.subr.mxu0 0.0
        %492 = vmatpush2.xpose.msra.mxu0 0.0
        %493 = vmatprep.subr.mxu0 0.0
        %494 = vmatpush2.xpose.msra.mxu0 0.0
        %495 = vmatprep.subr.mxu0 0.0
        %496 = vmatpush2.xpose.msra.mxu0 0.0
        %497 = vmatprep.subr.mxu0 0.0
        %498 = vmatpush2.xpose.msra.mxu0 0.0
        %499 = vmatprep.subr.mxu0 0.0
        %500 = vmatpush2.xpose.msra.mxu0 0.0
        %501 = vmatprep.mubr.f32.mxu0 0.0
        %502 = vmatmul.mubr.f32.gmra.mxu0 %v433
        %v503 = vpop.f32.mrf.mxu0
        %v504 = vadd.f32 0.0, %v503
        %v505 = vpop.f32.mrf.mxu0
        %506 = vdwg.mxu0
        %v507 = vmul.f32 %v504, 0.35355338
        %v508 = vsel %vm431, %v507, -inf
        %509 = vmax.xlane.f32.xlu0 %v508
        %v510 = vpop.xlane.xlu0 %509
        %v511 = vsub.f32 %v507, %v510
        %v512 = vmul.f32 %v511, 1.442695
        %v513 = vpow.pop %v512
        %v514 = vsel %vm431, %v513, 0.0
        %515 = vadd.xlane.f32.xlu0 %v514
        %v516 = vpop.xlane.xlu0 %515
        %v517 = vrcp.pop %v516
        %v518 = vmul.f32 %v513, %v517
        %519 = vrot.lane.b32.xlu0 %v425, 64
        %v520 = vpop.permute.xlu0 %519
        %v523 = vsel %vm431, %v518, 0
        %525 = vmatprep.subr.mxu0 0.0
        %526 = vmatpush1.msra.mxu0 0.0
        %527 = vmatprep.subr.mxu0 0.0
        %528 = vmatpush1.msra.mxu0 0.0
        %529 = vmatprep.subr.mxu0 0.0
        %530 = vmatpush1.msra.mxu0 0.0
        %531 = vmatprep.subr.mxu0 0.0
        %532 = vmatpush1.msra.mxu0 0.0
        %533 = vmatprep.subr.mxu0 0.0
        %534 = vmatpush1.msra.mxu0 0.0
        %535 = vmatprep.subr.mxu0 0.0
        %536 = vmatpush1.msra.mxu0 0.0
        %537 = vmatprep.subr.mxu0 0.0
        %538 = vmatpush1.msra.mxu0 0.0
        %539 = vmatprep.subr.mxu0 0.0
        %540 = vmatpush1.msra.mxu0 0.0
        %541 = vmatprep.subr.mxu0 0.0
        %542 = vmatpush1.msra.mxu0 0.0
        %543 = vmatprep.subr.mxu0 0.0
        %544 = vmatpush1.msra.mxu0 0.0
        %545 = vmatprep.subr.mxu0 0.0
        %546 = vmatpush1.msra.mxu0 0.0
        %547 = vmatprep.subr.mxu0 0.0
        %548 = vmatpush1.msra.mxu0 0.0
        %549 = vmatprep.subr.mxu0 0.0
        %550 = vmatpush1.msra.mxu0 0.0
        %551 = vmatprep.subr.mxu0 0.0
        %552 = vmatpush1.msra.mxu0 0.0
        %553 = vmatprep.subr.mxu0 0.0
        %554 = vmatpush1.msra.mxu0 0.0
        %555 = vmatprep.subr.mxu0 0.0
        %556 = vmatpush1.msra.mxu0 %v520
        %557 = vmatprep.subr.mxu0 0.0
        %558 = vmatpush2.msra.mxu0 0.0
        %559 = vmatprep.subr.mxu0 0.0
        %560 = vmatpush2.msra.mxu0 0.0
        %561 = vmatprep.subr.mxu0 0.0
        %562 = vmatpush2.msra.mxu0 0.0
        %563 = vmatprep.subr.mxu0 0.0
        %564 = vmatpush2.msra.mxu0 0.0
        %565 = vmatprep.subr.mxu0 0.0
        %566 = vmatpush2.msra.mxu0 0.0
        %567 = vmatprep.subr.mxu0 0.0
        %568 = vmatpush2.msra.mxu0 0.0
        %569 = vmatprep.subr.mxu0 0.0
        %570 = vmatpush2.msra.mxu0 0.0
        %571 = vmatprep.subr.mxu0 0.0
        %572 = vmatpush2.msra.mxu0 0.0
        %573 = vmatprep.subr.mxu0 0.0
        %574 = vmatpush2.msra.mxu0 0.0
        %575 = vmatprep.subr.mxu0 0.0
        %576 = vmatpush2.msra.mxu0 0.0
        %577 = vmatprep.subr.mxu0 0.0
        %578 = vmatpush2.msra.mxu0 0.0
        %579 = vmatprep.subr.mxu0 0.0
        %580 = vmatpush2.msra.mxu0 0.0
        %581 = vmatprep.subr.mxu0 0.0
        %582 = vmatpush2.msra.mxu0 0.0
        %583 = vmatprep.subr.mxu0 0.0
        %584 = vmatpush2.msra.mxu0 0.0
        %585 = vmatprep.subr.mxu0 0.0
        %586 = vmatpush2.msra.mxu0 0.0
        %587 = vmatprep.subr.mxu0 0.0
        %588 = vmatpush2.msra.mxu0 0.0
        %589 = vmatprep.mubr.f32.mxu0 0.0
        %590 = vmatmul.mubr.f32.gmra.mxu0 %v523
        %v591 = vpop.f32.mrf.mxu0
        %v592 = vadd.f32 0.0, %v591
        %v593 = vpop.f32.mrf.mxu0
        %594 = vdwg.mxu0
        %595 = vrot.lane.b32.xlu0 %v420, 120
        %v596 = vpop.permute.xlu0 %595
        %597 = vrot.lane.b32.xlu0 %v425, 88
        %v598 = vpop.permute.xlu0 %597
        %v599 = vsel %vm431, %v596, 0
        %v601 = vsel %vm431, %v598, 0
        %603 = vmatprep.subr.mxu0 0.0
        %604 = vmatpush1.xpose.msra.mxu0 0.0
        %605 = vmatprep.subr.mxu0 0.0
        %606 = vmatpush1.xpose.msra.mxu0 0.0
        %607 = vmatprep.subr.mxu0 0.0
        %608 = vmatpush1.xpose.msra.mxu0 0.0
        %609 = vmatprep.subr.mxu0 0.0
        %610 = vmatpush1.xpose.msra.mxu0 0.0
        %611 = vmatprep.subr.mxu0 0.0
        %612 = vmatpush1.xpose.msra.mxu0 0.0
        %613 = vmatprep.subr.mxu0 0.0
        %614 = vmatpush1.xpose.msra.mxu0 0.0
        %615 = vmatprep.subr.mxu0 0.0
        %616 = vmatpush1.xpose.msra.mxu0 0.0
        %617 = vmatprep.subr.mxu0 0.0
        %618 = vmatpush1.xpose.msra.mxu0 0.0
        %619 = vmatprep.subr.mxu0 0.0
        %620 = vmatpush1.xpose.msra.mxu0 0.0
        %621 = vmatprep.subr.mxu0 0.0
        %622 = vmatpush1.xpose.msra.mxu0 0.0
        %623 = vmatprep.subr.mxu0 0.0
        %624 = vmatpush1.xpose.msra.mxu0 0.0
        %625 = vmatprep.subr.mxu0 0.0
        %626 = vmatpush1.xpose.msra.mxu0 0.0
        %627 = vmatprep.subr.mxu0 0.0
        %628 = vmatpush1.xpose.msra.mxu0 0.0
        %629 = vmatprep.subr.mxu0 0.0
        %630 = vmatpush1.xpose.msra.mxu0 0.0
        %631 = vmatprep.subr.mxu0 0.0
        %632 = vmatpush1.xpose.msra.mxu0 0.0
        %633 = vmatprep.subr.mxu0 0.0
        %634 = vmatpush1.xpose.msra.mxu0 %v601
        %635 = vmatprep.subr.mxu0 0.0
        %636 = vmatpush2.xpose.msra.mxu0 0.0
        %637 = vmatprep.subr.mxu0 0.0
        %638 = vmatpush2.xpose.msra.mxu0 0.0
        %639 = vmatprep.subr.mxu0 0.0
        %640 = vmatpush2.xpose.msra.mxu0 0.0
        %641 = vmatprep.subr.mxu0 0.0
        %642 = vmatpush2.xpose.msra.mxu0 0.0
        %643 = vmatprep.subr.mxu0 0.0
        %644 = vmatpush2.xpose.msra.mxu0 0.0
        %645 = vmatprep.subr.mxu0 0.0
        %646 = vmatpush2.xpose.msra.mxu0 0.0
        %647 = vmatprep.subr.mxu0 0.0
        %648 = vmatpush2.xpose.msra.mxu0 0.0
        %649 = vmatprep.subr.mxu0 0.0
        %650 = vmatpush2.xpose.msra.mxu0 0.0
        %651 = vmatprep.subr.mxu0 0.0
        %652 = vmatpush2.xpose.msra.mxu0 0.0
        %653 = vmatprep.subr.mxu0 0.0
        %654 = vmatpush2.xpose.msra.mxu0 0.0
        %655 = vmatprep.subr.mxu0 0.0
        %656 = vmatpush2.xpose.msra.mxu0 0.0
        %657 = vmatprep.subr.mxu0 0.0
        %658 = vmatpush2.xpose.msra.mxu0 0.0
        %659 = vmatprep.subr.mxu0 0.0
        %660 = vmatpush2.xpose.msra.mxu0 0.0
        %661 = vmatprep.subr.mxu0 0.0
        %662 = vmatpush2.xpose.msra.mxu0 0.0
        %663 = vmatprep.subr.mxu0 0.0
        %664 = vmatpush2.xpose.msra.mxu0 0.0
        %665 = vmatprep.subr.mxu0 0.0
        %666 = vmatpush2.xpose.msra.mxu0 0.0
        %667 = vmatprep.mubr.f32.mxu0 0.0
        %668 = vmatmul.mubr.f32.gmra.mxu0 %v599
        %v669 = vpop.f32.mrf.mxu0
        %v670 = vadd.f32 0.0, %v669
        %v671 = vpop.f32.mrf.mxu0
        %672 = vdwg.mxu0
        %v673 = vmul.f32 %v670, 0.35355338
        %v674 = vsel %vm431, %v673, -inf
        %675 = vmax.xlane.f32.xlu0 %v674
        %v676 = vpop.xlane.xlu0 %675
        %v677 = vsub.f32 %v673, %v676
        %v678 = vmul.f32 %v677, 1.442695
        %v679 = vpow.pop %v678
        %v680 = vsel %vm431, %v679, 0.0
        %681 = vadd.xlane.f32.xlu0 %v680
        %v682 = vpop.xlane.xlu0 %681
        %v683 = vrcp.pop %v682
        %v684 = vmul.f32 %v679, %v683
        %685 = vrot.lane.b32.xlu0 %v425, 56
        %v686 = vpop.permute.xlu0 %685
        %v689 = vsel %vm431, %v684, 0
        %691 = vmatprep.subr.mxu0 0.0
        %692 = vmatpush1.msra.mxu0 0.0
        %693 = vmatprep.subr.mxu0 0.0
        %694 = vmatpush1.msra.mxu0 0.0
        %695 = vmatprep.subr.mxu0 0.0
        %696 = vmatpush1.msra.mxu0 0.0
        %697 = vmatprep.subr.mxu0 0.0
        %698 = vmatpush1.msra.mxu0 0.0
        %699 = vmatprep.subr.mxu0 0.0
        %700 = vmatpush1.msra.mxu0 0.0
        %701 = vmatprep.subr.mxu0 0.0
        %702 = vmatpush1.msra.mxu0 0.0
        %703 = vmatprep.subr.mxu0 0.0
        %704 = vmatpush1.msra.mxu0 0.0
        %705 = vmatprep.subr.mxu0 0.0
        %706 = vmatpush1.msra.mxu0 0.0
        %707 = vmatprep.subr.mxu0 0.0
        %708 = vmatpush1.msra.mxu0 0.0
        %709 = vmatprep.subr.mxu0 0.0
        %710 = vmatpush1.msra.mxu0 0.0
        %711 = vmatprep.subr.mxu0 0.0
        %712 = vmatpush1.msra.mxu0 0.0
        %713 = vmatprep.subr.mxu0 0.0
        %714 = vmatpush1.msra.mxu0 0.0
        %715 = vmatprep.subr.mxu0 0.0
        %716 = vmatpush1.msra.mxu0 0.0
        %717 = vmatprep.subr.mxu0 0.0
        %718 = vmatpush1.msra.mxu0 0.0
        %719 = vmatprep.subr.mxu0 0.0
        %720 = vmatpush1.msra.mxu0 0.0
        %721 = vmatprep.subr.mxu0 0.0
        %722 = vmatpush1.msra.mxu0 %v686
        %723 = vmatprep.subr.mxu0 0.0
        %724 = vmatpush2.msra.mxu0 0.0
        %725 = vmatprep.subr.mxu0 0.0
        %726 = vmatpush2.msra.mxu0 0.0
        %727 = vmatprep.subr.mxu0 0.0
        %728 = vmatpush2.msra.mxu0 0.0
        %729 = vmatprep.subr.mxu0 0.0
        %730 = vmatpush2.msra.mxu0 0.0
        %731 = vmatprep.subr.mxu0 0.0
        %732 = vmatpush2.msra.mxu0 0.0
        %733 = vmatprep.subr.mxu0 0.0
        %734 = vmatpush2.msra.mxu0 0.0
        %735 = vmatprep.subr.mxu0 0.0
        %736 = vmatpush2.msra.mxu0 0.0
        %737 = vmatprep.subr.mxu0 0.0
        %738 = vmatpush2.msra.mxu0 0.0
        %739 = vmatprep.subr.mxu0 0.0
        %740 = vmatpush2.msra.mxu0 0.0
        %741 = vmatprep.subr.mxu0 0.0
        %742 = vmatpush2.msra.mxu0 0.0
        %743 = vmatprep.subr.mxu0 0.0
        %744 = vmatpush2.msra.mxu0 0.0
        %745 = vmatprep.subr.mxu0 0.0
        %746 = vmatpush2.msra.mxu0 0.0
        %747 = vmatprep.subr.mxu0 0.0
        %748 = vmatpush2.msra.mxu0 0.0
        %749 = vmatprep.subr.mxu0 0.0
        %750 = vmatpush2.msra.mxu0 0.0
        %751 = vmatprep.subr.mxu0 0.0
        %752 = vmatpush2.msra.mxu0 0.0
        %753 = vmatprep.subr.mxu0 0.0
        %754 = vmatpush2.msra.mxu0 0.0
        %755 = vmatprep.mubr.f32.mxu0 0.0
        %756 = vmatmul.mubr.f32.gmra.mxu0 %v689
        %v757 = vpop.f32.mrf.mxu0
        %v758 = vadd.f32 0.0, %v757
        %v759 = vpop.f32.mrf.mxu0
        %760 = vdwg.mxu0
        %761 = vrot.lane.b32.xlu0 %v420, 112
        %v762 = vpop.permute.xlu0 %761
        %763 = vrot.lane.b32.xlu0 %v425, 80
        %v764 = vpop.permute.xlu0 %763
        %v765 = vsel %vm431, %v762, 0
        %v767 = vsel %vm431, %v764, 0
        %769 = vmatprep.subr.mxu0 0.0
        %770 = vmatpush1.xpose.msra.mxu0 0.0
        %771 = vmatprep.subr.mxu0 0.0
        %772 = vmatpush1.xpose.msra.mxu0 0.0
        %773 = vmatprep.subr.mxu0 0.0
        %774 = vmatpush1.xpose.msra.mxu0 0.0
        %775 = vmatprep.subr.mxu0 0.0
        %776 = vmatpush1.xpose.msra.mxu0 0.0
        %777 = vmatprep.subr.mxu0 0.0
        %778 = vmatpush1.xpose.msra.mxu0 0.0
        %779 = vmatprep.subr.mxu0 0.0
        %780 = vmatpush1.xpose.msra.mxu0 0.0
        %781 = vmatprep.subr.mxu0 0.0
        %782 = vmatpush1.xpose.msra.mxu0 0.0
        %783 = vmatprep.subr.mxu0 0.0
        %784 = vmatpush1.xpose.msra.mxu0 0.0
        %785 = vmatprep.subr.mxu0 0.0
        %786 = vmatpush1.xpose.msra.mxu0 0.0
        %787 = vmatprep.subr.mxu0 0.0
        %788 = vmatpush1.xpose.msra.mxu0 0.0
        %789 = vmatprep.subr.mxu0 0.0
        %790 = vmatpush1.xpose.msra.mxu0 0.0
        %791 = vmatprep.subr.mxu0 0.0
        %792 = vmatpush1.xpose.msra.mxu0 0.0
        %793 = vmatprep.subr.mxu0 0.0
        %794 = vmatpush1.xpose.msra.mxu0 0.0
        %795 = vmatprep.subr.mxu0 0.0
        %796 = vmatpush1.xpose.msra.mxu0 0.0
        %797 = vmatprep.subr.mxu0 0.0
        %798 = vmatpush1.xpose.msra.mxu0 0.0
        %799 = vmatprep.subr.mxu0 0.0
        %800 = vmatpush1.xpose.msra.mxu0 %v767
        %801 = vmatprep.subr.mxu0 0.0
        %802 = vmatpush2.xpose.msra.mxu0 0.0
        %803 = vmatprep.subr.mxu0 0.0
        %804 = vmatpush2.xpose.msra.mxu0 0.0
        %805 = vmatprep.subr.mxu0 0.0
        %806 = vmatpush2.xpose.msra.mxu0 0.0
        %807 = vmatprep.subr.mxu0 0.0
        %808 = vmatpush2.xpose.msra.mxu0 0.0
        %809 = vmatprep.subr.mxu0 0.0
        %810 = vmatpush2.xpose.msra.mxu0 0.0
        %811 = vmatprep.subr.mxu0 0.0
        %812 = vmatpush2.xpose.msra.mxu0 0.0
        %813 = vmatprep.subr.mxu0 0.0
        %814 = vmatpush2.xpose.msra.mxu0 0.0
        %815 = vmatprep.subr.mxu0 0.0
        %816 = vmatpush2.xpose.msra.mxu0 0.0
        %817 = vmatprep.subr.mxu0 0.0
        %818 = vmatpush2.xpose.msra.mxu0 0.0
        %819 = vmatprep.subr.mxu0 0.0
        %820 = vmatpush2.xpose.msra.mxu0 0.0
        %821 = vmatprep.subr.mxu0 0.0
        %822 = vmatpush2.xpose.msra.mxu0 0.0
        %823 = vmatprep.subr.mxu0 0.0
        %824 = vmatpush2.xpose.msra.mxu0 0.0
        %825 = vmatprep.subr.mxu0 0.0
        %826 = vmatpush2.xpose.msra.mxu0 0.0
        %827 = vmatprep.subr.mxu0 0.0
        %828 = vmatpush2.xpose.msra.mxu0 0.0
        %829 = vmatprep.subr.mxu0 0.0
        %830 = vmatpush2.xpose.msra.mxu0 0.0
        %831 = vmatprep.subr.mxu0 0.0
        %832 = vmatpush2.xpose.msra.mxu0 0.0
        %833 = vmatprep.mubr.f32.mxu0 0.0
        %834 = vmatmul.mubr.f32.gmra.mxu0 %v765
        %v835 = vpop.f32.mrf.mxu0
        %v836 = vadd.f32 0.0, %v835
        %v837 = vpop.f32.mrf.mxu0
        %838 = vdwg.mxu0
        %v839 = vmul.f32 %v836, 0.35355338
        %v840 = vsel %vm431, %v839, -inf
        %841 = vmax.xlane.f32.xlu0 %v840
        %v842 = vpop.xlane.xlu0 %841
        %v843 = vsub.f32 %v839, %v842
        %v844 = vmul.f32 %v843, 1.442695
        %v845 = vpow.pop %v844
        %v846 = vsel %vm431, %v845, 0.0
        %847 = vadd.xlane.f32.xlu0 %v846
        %v848 = vpop.xlane.xlu0 %847
        %v849 = vrcp.pop %v848
        %v850 = vmul.f32 %v845, %v849
        %851 = vrot.lane.b32.xlu0 %v425, 48
        %v852 = vpop.permute.xlu0 %851
        %v855 = vsel %vm431, %v850, 0
        %857 = vmatprep.subr.mxu0 0.0
        %858 = vmatpush1.msra.mxu0 0.0
        %859 = vmatprep.subr.mxu0 0.0
        %860 = vmatpush1.msra.mxu0 0.0
        %861 = vmatprep.subr.mxu0 0.0
        %862 = vmatpush1.msra.mxu0 0.0
        %863 = vmatprep.subr.mxu0 0.0
        %864 = vmatpush1.msra.mxu0 0.0
        %865 = vmatprep.subr.mxu0 0.0
        %866 = vmatpush1.msra.mxu0 0.0
        %867 = vmatprep.subr.mxu0 0.0
        %868 = vmatpush1.msra.mxu0 0.0
        %869 = vmatprep.subr.mxu0 0.0
        %870 = vmatpush1.msra.mxu0 0.0
        %871 = vmatprep.subr.mxu0 0.0
        %872 = vmatpush1.msra.mxu0 0.0
        %873 = vmatprep.subr.mxu0 0.0
        %874 = vmatpush1.msra.mxu0 0.0
        %875 = vmatprep.subr.mxu0 0.0
        %876 = vmatpush1.msra.mxu0 0.0
        %877 = vmatprep.subr.mxu0 0.0
        %878 = vmatpush1.msra.mxu0 0.0
        %879 = vmatprep.subr.mxu0 0.0
        %880 = vmatpush1.msra.mxu0 0.0
        %881 = vmatprep.subr.mxu0 0.0
        %882 = vmatpush1.msra.mxu0 0.0
        %883 = vmatprep.subr.mxu0 0.0
        %884 = vmatpush1.msra.mxu0 0.0
        %885 = vmatprep.subr.mxu0 0.0
        %886 = vmatpush1.msra.mxu0 0.0
        %887 = vmatprep.subr.mxu0 0.0
        %888 = vmatpush1.msra.mxu0 %v852
        %889 = vmatprep.subr.mxu0 0.0
        %890 = vmatpush2.msra.mxu0 0.0
        %891 = vmatprep.subr.mxu0 0.0
        %892 = vmatpush2.msra.mxu0 0.0
        %893 = vmatprep.subr.mxu0 0.0
        %894 = vmatpush2.msra.mxu0 0.0
        %895 = vmatprep.subr.mxu0 0.0
        %896 = vmatpush2.msra.mxu0 0.0
        %897 = vmatprep.subr.mxu0 0.0
        %898 = vmatpush2.msra.mxu0 0.0
        %899 = vmatprep.subr.mxu0 0.0
        %900 = vmatpush2.msra.mxu0 0.0
        %901 = vmatprep.subr.mxu0 0.0
        %902 = vmatpush2.msra.mxu0 0.0
        %903 = vmatprep.subr.mxu0 0.0
        %904 = vmatpush2.msra.mxu0 0.0
        %905 = vmatprep.subr.mxu0 0.0
        %906 = vmatpush2.msra.mxu0 0.0
        %907 = vmatprep.subr.mxu0 0.0
        %908 = vmatpush2.msra.mxu0 0.0
        %909 = vmatprep.subr.mxu0 0.0
        %910 = vmatpush2.msra.mxu0 0.0
        %911 = vmatprep.subr.mxu0 0.0
        %912 = vmatpush2.msra.mxu0 0.0
        %913 = vmatprep.subr.mxu0 0.0
        %914 = vmatpush2.msra.mxu0 0.0
        %915 = vmatprep.subr.mxu0 0.0
        %916 = vmatpush2.msra.mxu0 0.0
        %917 = vmatprep.subr.mxu0 0.0
        %918 = vmatpush2.msra.mxu0 0.0
        %919 = vmatprep.subr.mxu0 0.0
        %920 = vmatpush2.msra.mxu0 0.0
        %921 = vmatprep.mubr.f32.mxu0 0.0
        %922 = vmatmul.mubr.f32.gmra.mxu0 %v855
        %v923 = vpop.f32.mrf.mxu0
        %v924 = vadd.f32 0.0, %v923
        %v925 = vpop.f32.mrf.mxu0
        %926 = vdwg.mxu0
        %927 = vrot.lane.b32.xlu0 %v420, 104
        %v928 = vpop.permute.xlu0 %927
        %929 = vrot.lane.b32.xlu0 %v425, 72
        %v930 = vpop.permute.xlu0 %929
        %v931 = vsel %vm431, %v928, 0
        %v933 = vsel %vm431, %v930, 0
        %935 = vmatprep.subr.mxu0 0.0
        %936 = vmatpush1.xpose.msra.mxu0 0.0
        %937 = vmatprep.subr.mxu0 0.0
        %938 = vmatpush1.xpose.msra.mxu0 0.0
        %939 = vmatprep.subr.mxu0 0.0
        %940 = vmatpush1.xpose.msra.mxu0 0.0
        %941 = vmatprep.subr.mxu0 0.0
        %942 = vmatpush1.xpose.msra.mxu0 0.0
        %943 = vmatprep.subr.mxu0 0.0
        %944 = vmatpush1.xpose.msra.mxu0 0.0
        %945 = vmatprep.subr.mxu0 0.0
        %946 = vmatpush1.xpose.msra.mxu0 0.0
        %947 = vmatprep.subr.mxu0 0.0
        %948 = vmatpush1.xpose.msra.mxu0 0.0
        %949 = vmatprep.subr.mxu0 0.0
        %950 = vmatpush1.xpose.msra.mxu0 0.0
        %951 = vmatprep.subr.mxu0 0.0
        %952 = vmatpush1.xpose.msra.mxu0 0.0
        %953 = vmatprep.subr.mxu0 0.0
        %954 = vmatpush1.xpose.msra.mxu0 0.0
        %955 = vmatprep.subr.mxu0 0.0
        %956 = vmatpush1.xpose.msra.mxu0 0.0
        %957 = vmatprep.subr.mxu0 0.0
        %958 = vmatpush1.xpose.msra.mxu0 0.0
        %959 = vmatprep.subr.mxu0 0.0
        %960 = vmatpush1.xpose.msra.mxu0 0.0
        %961 = vmatprep.subr.mxu0 0.0
        %962 = vmatpush1.xpose.msra.mxu0 0.0
        %963 = vmatprep.subr.mxu0 0.0
        %964 = vmatpush1.xpose.msra.mxu0 0.0
        %965 = vmatprep.subr.mxu0 0.0
        %966 = vmatpush1.xpose.msra.mxu0 %v933
        %967 = vmatprep.subr.mxu0 0.0
        %968 = vmatpush2.xpose.msra.mxu0 0.0
        %969 = vmatprep.subr.mxu0 0.0
        %970 = vmatpush2.xpose.msra.mxu0 0.0
        %971 = vmatprep.subr.mxu0 0.0
        %972 = vmatpush2.xpose.msra.mxu0 0.0
        %973 = vmatprep.subr.mxu0 0.0
        %974 = vmatpush2.xpose.msra.mxu0 0.0
        %975 = vmatprep.subr.mxu0 0.0
        %976 = vmatpush2.xpose.msra.mxu0 0.0
        %977 = vmatprep.subr.mxu0 0.0
        %978 = vmatpush2.xpose.msra.mxu0 0.0
        %979 = vmatprep.subr.mxu0 0.0
        %980 = vmatpush2.xpose.msra.mxu0 0.0
        %981 = vmatprep.subr.mxu0 0.0
        %982 = vmatpush2.xpose.msra.mxu0 0.0
        %983 = vmatprep.subr.mxu0 0.0
        %984 = vmatpush2.xpose.msra.mxu0 0.0
        %985 = vmatprep.subr.mxu0 0.0
        %986 = vmatpush2.xpose.msra.mxu0 0.0
        %987 = vmatprep.subr.mxu0 0.0
        %988 = vmatpush2.xpose.msra.mxu0 0.0
        %989 = vmatprep.subr.mxu0 0.0
        %990 = vmatpush2.xpose.msra.mxu0 0.0
        %991 = vmatprep.subr.mxu0 0.0
        %992 = vmatpush2.xpose.msra.mxu0 0.0
        %993 = vmatprep.subr.mxu0 0.0
        %994 = vmatpush2.xpose.msra.mxu0 0.0
        %995 = vmatprep.subr.mxu0 0.0
        %996 = vmatpush2.xpose.msra.mxu0 0.0
        %997 = vmatprep.subr.mxu0 0.0
        %998 = vmatpush2.xpose.msra.mxu0 0.0
        %999 = vmatprep.mubr.f32.mxu0 0.0
        %1000 = vmatmul.mubr.f32.gmra.mxu0 %v931
        %v1001 = vpop.f32.mrf.mxu0
        %v1002 = vadd.f32 0.0, %v1001
        %v1003 = vpop.f32.mrf.mxu0
        %1004 = vdwg.mxu0
        %v1005 = vmul.f32 %v1002, 0.35355338
        %v1006 = vsel %vm431, %v1005, -inf
        %1007 = vmax.xlane.f32.xlu0 %v1006
        %v1008 = vpop.xlane.xlu0 %1007
        %v1009 = vsub.f32 %v1005, %v1008
        %v1010 = vmul.f32 %v1009, 1.442695
        %v1011 = vpow.pop %v1010
        %v1012 = vsel %vm431, %v1011, 0.0
        %1013 = vadd.xlane.f32.xlu0 %v1012
        %v1014 = vpop.xlane.xlu0 %1013
        %v1015 = vrcp.pop %v1014
        %v1016 = vmul.f32 %v1011, %v1015
        %1017 = vrot.lane.b32.xlu0 %v425, 40
        %v1018 = vpop.permute.xlu0 %1017
        %v1021 = vsel %vm431, %v1016, 0
        %1023 = vmatprep.subr.mxu0 0.0
        %1024 = vmatpush1.msra.mxu0 0.0
        %1025 = vmatprep.subr.mxu0 0.0
        %1026 = vmatpush1.msra.mxu0 0.0
        %1027 = vmatprep.subr.mxu0 0.0
        %1028 = vmatpush1.msra.mxu0 0.0
        %1029 = vmatprep.subr.mxu0 0.0
        %1030 = vmatpush1.msra.mxu0 0.0
        %1031 = vmatprep.subr.mxu0 0.0
        %1032 = vmatpush1.msra.mxu0 0.0
        %1033 = vmatprep.subr.mxu0 0.0
        %1034 = vmatpush1.msra.mxu0 0.0
        %1035 = vmatprep.subr.mxu0 0.0
        %1036 = vmatpush1.msra.mxu0 0.0
        %1037 = vmatprep.subr.mxu0 0.0
        %1038 = vmatpush1.msra.mxu0 0.0
        %1039 = vmatprep.subr.mxu0 0.0
        %1040 = vmatpush1.msra.mxu0 0.0
        %1041 = vmatprep.subr.mxu0 0.0
        %1042 = vmatpush1.msra.mxu0 0.0
        %1043 = vmatprep.subr.mxu0 0.0
        %1044 = vmatpush1.msra.mxu0 0.0
        %1045 = vmatprep.subr.mxu0 0.0
        %1046 = vmatpush1.msra.mxu0 0.0
        %1047 = vmatprep.subr.mxu0 0.0
        %1048 = vmatpush1.msra.mxu0 0.0
        %1049 = vmatprep.subr.mxu0 0.0
        %1050 = vmatpush1.msra.mxu0 0.0
        %1051 = vmatprep.subr.mxu0 0.0
        %1052 = vmatpush1.msra.mxu0 0.0
        %1053 = vmatprep.subr.mxu0 0.0
        %1054 = vmatpush1.msra.mxu0 %v1018
        %1055 = vmatprep.subr.mxu0 0.0
        %1056 = vmatpush2.msra.mxu0 0.0
        %1057 = vmatprep.subr.mxu0 0.0
        %1058 = vmatpush2.msra.mxu0 0.0
        %1059 = vmatprep.subr.mxu0 0.0
        %1060 = vmatpush2.msra.mxu0 0.0
        %1061 = vmatprep.subr.mxu0 0.0
        %1062 = vmatpush2.msra.mxu0 0.0
        %1063 = vmatprep.subr.mxu0 0.0
        %1064 = vmatpush2.msra.mxu0 0.0
        %1065 = vmatprep.subr.mxu0 0.0
        %1066 = vmatpush2.msra.mxu0 0.0
        %1067 = vmatprep.subr.mxu0 0.0
        %1068 = vmatpush2.msra.mxu0 0.0
        %1069 = vmatprep.subr.mxu0 0.0
        %1070 = vmatpush2.msra.mxu0 0.0
        %1071 = vmatprep.subr.mxu0 0.0
        %1072 = vmatpush2.msra.mxu0 0.0
        %1073 = vmatprep.subr.mxu0 0.0
        %1074 = vmatpush2.msra.mxu0 0.0
        %1075 = vmatprep.subr.mxu0 0.0
        %1076 = vmatpush2.msra.mxu0 0.0
        %1077 = vmatprep.subr.mxu0 0.0
        %1078 = vmatpush2.msra.mxu0 0.0
        %1079 = vmatprep.subr.mxu0 0.0
        %1080 = vmatpush2.msra.mxu0 0.0
        %1081 = vmatprep.subr.mxu0 0.0
        %1082 = vmatpush2.msra.mxu0 0.0
        %1083 = vmatprep.subr.mxu0 0.0
        %1084 = vmatpush2.msra.mxu0 0.0
        %1085 = vmatprep.subr.mxu0 0.0
        %1086 = vmatpush2.msra.mxu0 0.0
        %1087 = vmatprep.mubr.f32.mxu0 0.0
        %1088 = vmatmul.mubr.f32.gmra.mxu0 %v1021
        %v1089 = vpop.f32.mrf.mxu0
        %v1090 = vadd.f32 0.0, %v1089
        %v1091 = vpop.f32.mrf.mxu0
        %1092 = vdwg.mxu0
        %1094 = vrot.lane.b32.xlu0 %v758, 8
        %v1095 = vpop.permute.xlu0 %1094
        %1098 = vrot.lane.b32.xlu0 %v924, 16
        %v1099 = vpop.permute.xlu0 %1098
        %1102 = vrot.lane.b32.xlu0 %v1090, 24
        %v1103 = vpop.permute.xlu0 %1102
        %v1105 = vsel %vm431, %v592, %v1095
        %vm1106 = vcmask 130048
        %v1107 = vsel %vm1106, %v1105, %v1099
        %vm1108 = vcmask 195584
        %v1109 = vsel %vm1108, %v1107, %v1103
        %v1110 = vld [vmem:[#allocation8] sm:$0xff]
        %v1111 = vld [vmem:[#allocation8 + $0x8] sm:$0xff]
        %v1112 = vld [vmem:[#allocation8 + $0x10] sm:$0xff]
        %v1113 = vld [vmem:[#allocation8 + $0x18] sm:$0xff]
        %v1114 = vld [vmem:[%s5] sm:$0x1]
        %v1116 = vlaneseq
        %v1117 = vshrl.u32 %v1116, 7
        %v1118 = vsub.s32 0, %v1117
        %v1119 = vrot.slane %v1114, %v1118
        %v1122 = vsel %vm346, %v1109, 0
        %1124 = vmatprep.subr.mxu0 0.0
        %1125 = vmatpush1.msra.mxu0 0.0
        %1126 = vmatprep.subr.mxu0 0.0
        %1127 = vmatpush1.msra.mxu0 0.0
        %1128 = vmatprep.subr.mxu0 0.0
        %1129 = vmatpush1.msra.mxu0 0.0
        %1130 = vmatprep.subr.mxu0 0.0
        %1131 = vmatpush1.msra.mxu0 0.0
        %1132 = vmatprep.subr.mxu0 0.0
        %1133 = vmatpush1.msra.mxu0 0.0
        %1134 = vmatprep.subr.mxu0 0.0
        %1135 = vmatpush1.msra.mxu0 0.0
        %1136 = vmatprep.subr.mxu0 0.0
        %1137 = vmatpush1.msra.mxu0 0.0
        %1138 = vmatprep.subr.mxu0 0.0
        %1139 = vmatpush1.msra.mxu0 0.0
        %1140 = vmatprep.subr.mxu0 0.0
        %1141 = vmatpush1.msra.mxu0 0.0
        %1142 = vmatprep.subr.mxu0 0.0
        %1143 = vmatpush1.msra.mxu0 0.0
        %1144 = vmatprep.subr.mxu0 0.0
        %1145 = vmatpush1.msra.mxu0 0.0
        %1146 = vmatprep.subr.mxu0 0.0
        %1147 = vmatpush1.msra.mxu0 0.0
        %1148 = vmatprep.subr.mxu0 0.0
        %1149 = vmatpush1.msra.mxu0 %v1113
        %1150 = vmatprep.subr.mxu0 0.0
        %1151 = vmatpush1.msra.mxu0 %v1112
        %1152 = vmatprep.subr.mxu0 0.0
        %1153 = vmatpush1.msra.mxu0 %v1111
        %1154 = vmatprep.subr.mxu0 0.0
        %1155 = vmatpush1.msra.mxu0 %v1110
        %1156 = vmatprep.subr.mxu0 0.0
        %1157 = vmatpush2.msra.mxu0 0.0
        %1158 = vmatprep.subr.mxu0 0.0
        %1159 = vmatpush2.msra.mxu0 0.0
        %1160 = vmatprep.subr.mxu0 0.0
        %1161 = vmatpush2.msra.mxu0 0.0
        %1162 = vmatprep.subr.mxu0 0.0
        %1163 = vmatpush2.msra.mxu0 0.0
        %1164 = vmatprep.subr.mxu0 0.0
        %1165 = vmatpush2.msra.mxu0 0.0
        %1166 = vmatprep.subr.mxu0 0.0
        %1167 = vmatpush2.msra.mxu0 0.0
        %1168 = vmatprep.subr.mxu0 0.0
        %1169 = vmatpush2.msra.mxu0 0.0
        %1170 = vmatprep.subr.mxu0 0.0
        %1171 = vmatpush2.msra.mxu0 0.0
        %1172 = vmatprep.subr.mxu0 0.0
        %1173 = vmatpush2.msra.mxu0 0.0
        %1174 = vmatprep.subr.mxu0 0.0
        %1175 = vmatpush2.msra.mxu0 0.0
        %1176 = vmatprep.subr.mxu0 0.0
        %1177 = vmatpush2.msra.mxu0 0.0
        %1178 = vmatprep.subr.mxu0 0.0
        %1179 = vmatpush2.msra.mxu0 0.0
        %1180 = vmatprep.subr.mxu0 0.0
        %1181 = vmatpush2.msra.mxu0 0.0
        %1182 = vmatprep.subr.mxu0 0.0
        %1183 = vmatpush2.msra.mxu0 0.0
        %1184 = vmatprep.subr.mxu0 0.0
        %1185 = vmatpush2.msra.mxu0 0.0
        %1186 = vmatprep.subr.mxu0 0.0
        %1187 = vmatpush2.msra.mxu0 0.0
        %1188 = vmatprep.mubr.f32.mxu0 0.0
        %1189 = vmatmul.mubr.f32.gmra.mxu0 %v1122
        %v1190 = vpop.f32.mrf.mxu0
        %v1191 = vadd.f32 %v1119, %v1190
        %v1192 = vpop.f32.mrf.mxu0
        %1193 = vdwg.mxu0
        %1194 = vst.msk [vmem:[%s332] sm:$0xff] %vm346, %v1191
        %s1195 = sand.u32 %s171, 1
        %s1196 = scalar_lea.sflag [#allocation4], %s1195
        %s1197 = sand.u32 %s171, 1
        %s1198 = smul.addr %s1197, 8
        %s1199 = scalar_lea.vmem [#allocation10], %s1198
        // Predicated region
        $region61: #{encoder_decoder_attention.1} parent=43 // pred_check
          %p1200 = pneg %p181
        $region62: #{encoder_decoder_attention.1} parent=43 // pred_check_branch
          %1202 = sbr.rel (%p1200) target = $region64
        $region63: #{encoder_decoder_attention.1} parent=43 // pred_region
          %s1204 = ssub.s32 128, 128
          %1205 = vsyncadd %s1196, %s1204
          %s1206 = smul.addr %s27, 128
          %s1207 = scalar_lea.hbm %s6, %s1206
          %s1209 = sshll.u32 %s1199, 4
          %s1210 = int_to_ptr.vmem [resolvable:$true] %s1209
          %1212 = dma.vmem_to_hbm [thread:$0]  %s1210, 128, %s1207, %s1196
        $region64: #{encoder_decoder_attention.1} parent=43 // pred_fallthru
          _
      $region44: #{encoder_decoder_attention.1} parent=5 // pred_fallthru
        _
      %p1213 = scmp.le.s32.totalorder 2, %s22
      // Predicated region
      $region65: #{encoder_decoder_attention.1} parent=5 // pred_check
        %p1214 = pneg %p1213
      $region66: #{encoder_decoder_attention.1} parent=5 // pred_check_branch
        %1216 = sbr.rel (%p1214) target = $region68
      $region67: #{encoder_decoder_attention.1} parent=5 // pred_region
        %s1217 = ssub.s32 %s22, 2
        // Predicated region
        $region69: #{encoder_decoder_attention.1} parent=67 // pred_check
          %p1218 = pneg %p187
        $region70: #{encoder_decoder_attention.1} parent=67 // pred_check_branch
          %1220 = sbr.rel (%p1218) target = $region72
        $region71: #{encoder_decoder_attention.1} parent=67 // pred_region
          %s1221 = sand.u32 %s172, 1
          %s1222 = scalar_lea.sflag [#allocation4], %s1221
          %s1223 = sand.u32 %s172, 1
          %s1224 = smul.addr %s1223, 8
          %s1225 = scalar_lea.vmem [#allocation10], %s1224
          %1226 = dma.done %s1222, 128
        $region72: #{encoder_decoder_attention.1} parent=67 // pred_fallthru
          _
      $region68: #{encoder_decoder_attention.1} parent=5 // pred_fallthru
        _
    $region6: #{encoder_decoder_attention.1} parent=1 // loop_footer
      %s26 = sadd.s32 1, %s22
    $region7: #{encoder_decoder_attention.1} parent=1 // loop_footer_branch
      %21 = sbr.rel target = $region3
    $region8: #{encoder_decoder_attention.1} parent=1 // loop_exit
      _
    %1227 = vsyncpa [#allocation3], 1
    %s1228 = scalar_lea.sflag [#allocation3], 1
    %1229 = vsyncpa %s1228, 1
    %1230 = vsyncpa [#allocation6], 1
    %s1231 = scalar_lea.sflag [#allocation6], 1
    %1232 = vsyncpa %s1231, 1
    %1233 = vsyncpa [#allocation9], 1
    %1234 = vsyncpa [#allocation4], 1
    %s1235 = scalar_lea.sflag [#allocation4], 1
    %1236 = vsyncpa %s1235, 1

</llo_original>
